<compile_context>
chip_gen: v6e
topology: v6e:2x2x1
jax: 0.10.0
libtpu: 0.0.40
codegen_flags: <defaults>
</compile_context>

<pallas_src>
import jax
import jax.numpy as jnp
from jax.experimental import pallas as pl
from jax.experimental.pallas import tpu as pltpu

_LANE = 128
_SUBLANE = 8
_NEG_BIG = -1e30  # padding value: exp() underflows to exactly 0, stays finite


def gsmp_kernel(x_ref, o_ref, m_ref, d_ref, a_ref):
    """Process one (ts, tn) chunk of the online softmax-weighted reduction."""
    k = pl.program_id(1)

    @pl.when(k == 0)
    def _init():
        m_ref[...] = jnp.full_like(m_ref, -jnp.inf)
        d_ref[...] = jnp.zeros_like(d_ref)
        a_ref[...] = jnp.zeros_like(a_ref)

    # TODO(synk): for bf16 inputs on v6e/v7x the max/exp could run in bf16 to
    # halve the temporary footprint; f32 kept here for accumulation accuracy.
    xf = x_ref[...].astype(jnp.float32)                          # (ts, tn)
    m_new = jnp.maximum(m_ref[...], jnp.max(xf, axis=0, keepdims=True))
    alpha = jnp.exp(m_ref[...] - m_new)                          # rescale old state
    e = jnp.exp(xf - m_new)                                      # (ts, tn)
    d_ref[...] = alpha * d_ref[...] + jnp.sum(e, axis=0, keepdims=True)
    a_ref[...] = alpha * a_ref[...] + jnp.sum(xf * e, axis=0, keepdims=True)
    m_ref[...] = m_new

    @pl.when(k == pl.num_programs(1) - 1)
    def _finalize():
        inv = pl.reciprocal(d_ref[...], approx=False)  # once per output element
        o_ref[...] = (a_ref[...] * inv).astype(o_ref.dtype)


def global_softmax_pooling(x, *, tn_max=512, seq_chunk_bytes=2 * 1024 * 1024):
    """x: (S, B, H) float array. Returns (B, H) = sum_S x * softmax(x, axis=0)."""
    S, B, H = x.shape
    N = B * H
    x2 = x.reshape(S, N)

    # Lane-dense output tile width: multiple of 128 that divides padded N.
    n_pad = pl.cdiv(N, _LANE) * _LANE
    tn = _LANE
    for cand in (512, 256, 128):
        if cand <= tn_max and n_pad % cand == 0:
            tn = cand
            break

    # S chunk: multiple of 8, capped so one f32 chunk stays ~seq_chunk_bytes
    # (keeps the double-buffered working set comfortably inside v7x's VMEM).
    ts_cap = max(_SUBLANE, (seq_chunk_bytes // (4 * tn)) // _SUBLANE * _SUBLANE)
    ts = min(pl.cdiv(S, _SUBLANE) * _SUBLANE, ts_cap)
    s_pad = pl.cdiv(S, ts) * ts

    if (s_pad, n_pad) != (S, N):
        # Padded rows: exp underflows to exactly 0 -> no contribution.
        # Padded cols: produce finite garbage that is sliced off below.
        x2 = jnp.pad(x2, ((0, s_pad - S), (0, n_pad - N)),
                     constant_values=_NEG_BIG)

    grid = (n_pad // tn, s_pad // ts)
    itemsize = x.dtype.itemsize

    out2d = pl.pallas_call(
        gsmp_kernel,
        out_shape=jax.ShapeDtypeStruct((1, n_pad), x.dtype),
        grid_spec=pltpu.PrefetchScalarGridSpec(
            num_scalar_prefetch=0,
            grid=grid,
            in_specs=[pl.BlockSpec((ts, tn), lambda j, k: (k, j))],
            out_specs=pl.BlockSpec((1, tn), lambda j, k: (0, j)),
            scratch_shapes=[
                pltpu.VMEM((1, tn), jnp.float32),   # running max
                pltpu.VMEM((1, tn), jnp.float32),   # running denom
                pltpu.VMEM((1, tn), jnp.float32),   # running weighted sum
            ],
        ),
        compiler_params=pltpu.CompilerParams(
            dimension_semantics=("parallel", "arbitrary"),
            vmem_limit_bytes=32 * 1024 * 1024,
        ),
        cost_estimate=pl.CostEstimate(
            flops=5 * s_pad * n_pad,
            transcendentals=s_pad * n_pad,
            bytes_accessed=itemsize * (s_pad * n_pad + n_pad),
        ),
    )(x2)

    return out2d[0, :N].reshape(B, H)


def _reference(x):
    # pure-JAX reference for correctness check
    w = jax.nn.softmax(x, axis=0)
    return jnp.sum(x * w, axis=0)


if __name__ == "__main__":
    # Small shape consistent with the module's dim=0 reduction:
    # seq=8 (reduction dim), batch=2, hidden=32.
    key = jax.random.PRNGKey(0)
    S, B, H = 8, 2, 32
    x = jax.random.normal(key, (S, B, H), dtype=jnp.float32)

    out = jax.block_until_ready(global_softmax_pooling(x))
    ref = _reference(x)
    assert out.shape == (B, H), out.shape
    assert jnp.allclose(out, ref, atol=1e-5, rtol=1e-5), "mismatch vs reference"

    # Exercise the online multi-chunk S path (row padding + running rescale)
    # by forcing a tiny per-chunk budget: S=21 -> 3 chunks of 8 rows.
    S2, B2, H2 = 21, 2, 48
    x2 = jax.random.normal(jax.random.PRNGKey(0), (S2, B2, H2), dtype=jnp.float32)
    out2 = jax.block_until_ready(
        global_softmax_pooling(x2, seq_chunk_bytes=4096))
    ref2 = _reference(x2)
    assert out2.shape == (B2, H2), out2.shape
    assert jnp.allclose(out2, ref2, atol=1e-5, rtol=1e-5), "online path mismatch"

    print("KERNEL_OK")
</pallas_src>

<mosaic_0001>
module attributes {stable_mosaic.version = 11 : i64} {
  func.func @gsmp_kernel(%arg0: i32, %arg1: i32, %arg2: memref<8x128xf32, #tpu.memory_space<vmem>>, %arg3: memref<1x128xf32, #tpu.memory_space<vmem>>, %arg4: memref<1x128xf32, #tpu.memory_space<vmem>>, %arg5: memref<1x128xf32, #tpu.memory_space<vmem>>, %arg6: memref<1x128xf32, #tpu.memory_space<vmem>>) attributes {dimension_semantics = [#tpu.dimension_semantics<parallel>, #tpu.dimension_semantics<arbitrary>], iteration_bounds = array<i64: 1, 1>, scalar_prefetch = 0 : i64, scratch_operands = 3 : i64, tpu.core_type = #tpu.core_type<tc>, window_params = [{transform_indices = @transform_0, window_bounds = array<i64: 8, 128>}, {transform_indices = @transform_1, window_bounds = array<i64: 1, 128>}]} {
    %c0_i32 = arith.constant 0 : i32
    %0 = arith.cmpi eq, %arg1, %c0_i32 : i32
    %1 = arith.extui %0 : i1 to i32
    %c0_i32_0 = arith.constant 0 : i32
    %2 = arith.cmpi ne, %1, %c0_i32_0 : i32
    scf.if %2 {
      %cst_20 = arith.constant 0xFF800000 : f32
      %31 = vector.broadcast %cst_20 : f32 to vector<1x128xf32>
      %c0_21 = arith.constant 0 : index
      %c0_22 = arith.constant 0 : index
      %32 = vector.load %arg4[%c0_21, %c0_22] : memref<1x128xf32, #tpu.memory_space<vmem>>, vector<1x128xf32>
      tpu.vector_store %arg4[%c0_21, %c0_22], %31 {strides = array<i32>} : memref<1x128xf32, #tpu.memory_space<vmem>>, vector<1x128xf32>,
      %cst_23 = arith.constant 0.000000e+00 : f32
      %33 = vector.broadcast %cst_23 : f32 to vector<1x128xf32>
      %c0_24 = arith.constant 0 : index
      %c0_25 = arith.constant 0 : index
      %34 = vector.load %arg5[%c0_24, %c0_25] : memref<1x128xf32, #tpu.memory_space<vmem>>, vector<1x128xf32>
      tpu.vector_store %arg5[%c0_24, %c0_25], %33 {strides = array<i32>} : memref<1x128xf32, #tpu.memory_space<vmem>>, vector<1x128xf32>,
      %cst_26 = arith.constant 0.000000e+00 : f32
      %35 = vector.broadcast %cst_26 : f32 to vector<1x128xf32>
      %c0_27 = arith.constant 0 : index
      %c0_28 = arith.constant 0 : index
      %36 = vector.load %arg6[%c0_27, %c0_28] : memref<1x128xf32, #tpu.memory_space<vmem>>, vector<1x128xf32>
      tpu.vector_store %arg6[%c0_27, %c0_28], %35 {strides = array<i32>} : memref<1x128xf32, #tpu.memory_space<vmem>>, vector<1x128xf32>,
    } else {
    }
    %c0 = arith.constant 0 : index
    %c0_1 = arith.constant 0 : index
    %3 = vector.load %arg2[%c0, %c0_1] : memref<8x128xf32, #tpu.memory_space<vmem>>, vector<8x128xf32>
    %c0_2 = arith.constant 0 : index
    %c0_3 = arith.constant 0 : index
    %4 = vector.load %arg4[%c0_2, %c0_3] : memref<1x128xf32, #tpu.memory_space<vmem>>, vector<1x128xf32>
    %cst = arith.constant dense<0xFF800000> : vector<128xf32>
    %5 = vector.multi_reduction <maximumf>, %3, %cst [0] : vector<8x128xf32> to vector<128xf32>
    %6 = vector.shape_cast %5 : vector<128xf32> to vector<1x128xf32>
    %7 = arith.maximumf %4, %6 : vector<1x128xf32>
    %c0_4 = arith.constant 0 : index
    %c0_5 = arith.constant 0 : index
    %8 = vector.load %arg4[%c0_4, %c0_5] : memref<1x128xf32, #tpu.memory_space<vmem>>, vector<1x128xf32>
    %9 = arith.subf %8, %7 : vector<1x128xf32>
    %10 = math.exp %9 : vector<1x128xf32>
    %11 = vector.broadcast %7 : vector<1x128xf32> to vector<8x128xf32>
    %12 = arith.subf %3, %11 : vector<8x128xf32>
    %13 = math.exp %12 : vector<8x128xf32>
    %c0_6 = arith.constant 0 : index
    %c0_7 = arith.constant 0 : index
    %14 = vector.load %arg5[%c0_6, %c0_7] : memref<1x128xf32, #tpu.memory_space<vmem>>, vector<1x128xf32>
    %15 = arith.mulf %10, %14 : vector<1x128xf32>
    %cst_8 = arith.constant dense<0.000000e+00> : vector<128xf32>
    %16 = vector.multi_reduction <add>, %13, %cst_8 [0] : vector<8x128xf32> to vector<128xf32>
    %17 = vector.shape_cast %16 : vector<128xf32> to vector<1x128xf32>
    %18 = arith.addf %15, %17 : vector<1x128xf32>
    %c0_9 = arith.constant 0 : index
    %c0_10 = arith.constant 0 : index
    %19 = vector.load %arg5[%c0_9, %c0_10] : memref<1x128xf32, #tpu.memory_space<vmem>>, vector<1x128xf32>
    tpu.vector_store %arg5[%c0_9, %c0_10], %18 {strides = array<i32>} : memref<1x128xf32, #tpu.memory_space<vmem>>, vector<1x128xf32>,
    %c0_11 = arith.constant 0 : index
    %c0_12 = arith.constant 0 : index
    %20 = vector.load %arg6[%c0_11, %c0_12] : memref<1x128xf32, #tpu.memory_space<vmem>>, vector<1x128xf32>
    %21 = arith.mulf %10, %20 : vector<1x128xf32>
    %22 = arith.mulf %3, %13 : vector<8x128xf32>
    %cst_13 = arith.constant dense<0.000000e+00> : vector<128xf32>
    %23 = vector.multi_reduction <add>, %22, %cst_13 [0] : vector<8x128xf32> to vector<128xf32>
    %24 = vector.shape_cast %23 : vector<128xf32> to vector<1x128xf32>
    %25 = arith.addf %21, %24 : vector<1x128xf32>
    %c0_14 = arith.constant 0 : index
    %c0_15 = arith.constant 0 : index
    %26 = vector.load %arg6[%c0_14, %c0_15] : memref<1x128xf32, #tpu.memory_space<vmem>>, vector<1x128xf32>
    tpu.vector_store %arg6[%c0_14, %c0_15], %25 {strides = array<i32>} : memref<1x128xf32, #tpu.memory_space<vmem>>, vector<1x128xf32>,
    %c0_16 = arith.constant 0 : index
    %c0_17 = arith.constant 0 : index
    %27 = vector.load %arg4[%c0_16, %c0_17] : memref<1x128xf32, #tpu.memory_space<vmem>>, vector<1x128xf32>
    tpu.vector_store %arg4[%c0_16, %c0_17], %7 {strides = array<i32>} : memref<1x128xf32, #tpu.memory_space<vmem>>, vector<1x128xf32>,
    %c0_i32_18 = arith.constant 0 : i32
    %28 = arith.cmpi eq, %arg1, %c0_i32_18 : i32
    %29 = arith.extui %28 : i1 to i32
    %c0_i32_19 = arith.constant 0 : i32
    %30 = arith.cmpi ne, %29, %c0_i32_19 : i32
    scf.if %30 {
      %c0_20 = arith.constant 0 : index
      %c0_21 = arith.constant 0 : index
      %31 = vector.load %arg5[%c0_20, %c0_21] : memref<1x128xf32, #tpu.memory_space<vmem>>, vector<1x128xf32>
      %32 = tpu.reciprocal %31 : vector<1x128xf32> -> vector<1x128xf32>
      %c0_22 = arith.constant 0 : index
      %c0_23 = arith.constant 0 : index
      %33 = vector.load %arg6[%c0_22, %c0_23] : memref<1x128xf32, #tpu.memory_space<vmem>>, vector<1x128xf32>
      %34 = arith.mulf %33, %32 : vector<1x128xf32>
      %c0_24 = arith.constant 0 : index
      %c0_25 = arith.constant 0 : index
      %35 = vector.load %arg3[%c0_24, %c0_25] : memref<1x128xf32, #tpu.memory_space<vmem>>, vector<1x128xf32>
      tpu.vector_store %arg3[%c0_24, %c0_25], %34 {strides = array<i32>} : memref<1x128xf32, #tpu.memory_space<vmem>>, vector<1x128xf32>,
    } else {
    }
    return
  }
  func.func @transform_0(%arg0: i32, %arg1: i32) -> (i32, i32) {
    %c0_i32 = arith.constant 0 : i32
    return %arg1, %arg0 : i32, i32
  }
  func.func @transform_1(%arg0: i32, %arg1: i32) -> (i32, i32) {
    %c0_i32 = arith.constant 0 : i32
    %c0_i32_0 = arith.constant 0 : i32
    return %c0_i32, %arg0 : i32, i32
  }
}

</mosaic_0001>

<llo_original>
// kernel: tpu_custom_call.1
$region0: #{tpu_custom_call.1}
  #allocation0 [shape = 'u32[]', space=smem, size = 0x4, offset = 0x4, fixed_abs, tag = 'smem constant byte address 0x4 - core index']
  #allocation1 [shape = 'u32[144,128]{1,0:T(1,128)}', space=vmem, size = 0x12000, scoped, tag = 'internal scratch']
  #allocation2 [shape = 'f32[1,128]{1,0:T(1,128)}', space=vmem, size = 0x200, scoped, tag = 'scratch operand']
  #allocation3 [shape = 'f32[1,128]{1,0:T(1,128)}', space=vmem, size = 0x200, scoped, tag = 'scratch operand']
  #allocation4 [shape = 'f32[1,128]{1,0:T(1,128)}', space=vmem, size = 0x200, scoped, tag = 'scratch operand']
  %s0 = inlined_call_operand.hbm [shape: f32[8,128], index: 0, kind: input, shape index: {}]
  %s1 = inlined_call_operand.hbm [shape: f32[1,128], index: 1, kind: output, shape index: {}]
  %s2 = sld [smem:[#allocation0]]
  $region26: #{tpu_custom_call.1} parent=0
    _
  %s4 = ssub.s32 1, %s2
  %s5 = scalar_select 0, %s4, %s2
  $region1: #{tpu_custom_call.1} parent=0
    #allocation5 [shape = 'u8[4096]{0}', space=vmem, size = 0x1000, scoped, tag = 'input window, operand 0, single buffered']
    #allocation6 [shape = 's32[1]{0}', space=sflag, size = 0x4, scoped, tag = 'scoped memory for tpu_custom_call.1']
    #allocation7 [shape = 's32[1]{0}', space=sflag, size = 0x4, scoped, tag = 'scoped memory for tpu_custom_call.1']
    #allocation8 [shape = 'u8[512]{0}', space=vmem, size = 0x400, scoped, tag = 'output window, operand 0, single buffered']
    %6 = vsyncpa [#allocation6], 0
    %7 = vsyncpa [#allocation7], 0
    // Predicated region
    $region2: #{tpu_custom_call.1} parent=1 // pred_check
      _
    $region3: #{tpu_custom_call.1} parent=1 // pred_check_branch
      %9 = sbr.rel (0) target = $region5
    $region4: #{tpu_custom_call.1} parent=1 // pred_region
      %s11 = ssub.s32 128, 128
      %12 = vsyncadd [#allocation6], %s11
      %s14 = sshll.u32 [#allocation5], 4
      %s15 = int_to_ptr.vmem [resolvable:$true] %s14
      %17 = dma.hbm_to_vmem [thread:$0]  %s0, 128, %s15, [#allocation6]
    $region5: #{tpu_custom_call.1} parent=1 // pred_fallthru
      _
    // Predicated region
    $region6: #{tpu_custom_call.1} parent=1 // pred_check
      _
    $region7: #{tpu_custom_call.1} parent=1 // pred_check_branch
      %19 = sbr.rel (0) target = $region9
    $region8: #{tpu_custom_call.1} parent=1 // pred_region
      %20 = dma.done [#allocation6], 128
    $region9: #{tpu_custom_call.1} parent=1 // pred_fallthru
      _
    %p21 = scmp.eq.s32.totalorder 0, 0
    // Predicated region
    $region10: #{tpu_custom_call.1} parent=1 // pred_check
      %p22 = pneg %p21
    $region11: #{tpu_custom_call.1} parent=1 // pred_check_branch
      %24 = sbr.rel (%p22) target = $region13
    $region12: #{tpu_custom_call.1} parent=1 // pred_region
      %25 = vst [vmem:[#allocation2] sm:$0x1] -inf
      %26 = vst [vmem:[#allocation3] sm:$0x1] 0.0
      %27 = vst [vmem:[#allocation4] sm:$0x1] 0.0
    $region13: #{tpu_custom_call.1} parent=1 // pred_fallthru
      _
    %v28 = vld [vmem:[#allocation5] sm:$0xff]
    %v29 = vld [vmem:[#allocation2] sm:$0x1]
    %v30 = vrot.slane %v28, 4
    %v31 = vmax.f32 %v28, %v30
    %v32 = vrot.slane %v31, 2
    %v33 = vmax.f32 %v31, %v32
    %v34 = vrot.slane %v33, 1
    %v35 = vmax.f32 %v33, %v34
    %v36 = vmax.f32 %v29, %v35
    %v37 = vsub.f32 %v29, %v36
    %v38 = vmul.f32 %v37, 1.442695
    %v39 = vpow.pop %v38
    %v41 = vlaneseq
    %v42 = vshrl.u32 %v41, 7
    %v43 = vsub.s32 0, %v42
    %v44 = vrot.slane %v36, %v43
    %v46 = vsub.f32 %v28, %v44
    %v47 = vmul.f32 %v46, 1.442695
    %v48 = vpow.pop %v47
    %v49 = vld [vmem:[#allocation3] sm:$0x1]
    %v50 = vmul.f32 %v39, %v49
    %v51 = vrot.slane %v48, 4
    %v52 = vadd.f32 %v48, %v51
    %v53 = vrot.slane %v52, 2
    %v54 = vadd.f32 %v52, %v53
    %v55 = vrot.slane %v54, 1
    %v56 = vadd.f32 %v54, %v55
    %v57 = vadd.f32 %v50, %v56
    %58 = vst [vmem:[#allocation3] sm:$0x1] %v57
    %v59 = vld [vmem:[#allocation4] sm:$0x1]
    %v60 = vmul.f32 %v39, %v59
    %v61 = vmul.f32 %v28, %v48
    %v62 = vrot.slane %v61, 4
    %v63 = vadd.f32 %v61, %v62
    %v64 = vrot.slane %v63, 2
    %v65 = vadd.f32 %v63, %v64
    %v66 = vrot.slane %v65, 1
    %v67 = vadd.f32 %v65, %v66
    %v68 = vadd.f32 %v60, %v67
    %69 = vst [vmem:[#allocation4] sm:$0x1] %v68
    %70 = vst [vmem:[#allocation2] sm:$0x1] %v36
    // Predicated region
    $region14: #{tpu_custom_call.1} parent=1 // pred_check
      %p71 = pneg %p21
    $region15: #{tpu_custom_call.1} parent=1 // pred_check_branch
      %73 = sbr.rel (%p71) target = $region17
    $region16: #{tpu_custom_call.1} parent=1 // pred_region
      %v74 = vld [vmem:[#allocation3] sm:$0x1]
      %v75 = vrcp.pop %v74
      %v76 = vld [vmem:[#allocation4] sm:$0x1]
      %v77 = vmul.f32 %v76, %v75
      %78 = vst [vmem:[#allocation8] sm:$0x1] %v77
    $region17: #{tpu_custom_call.1} parent=1 // pred_fallthru
      _
    // Predicated region
    $region18: #{tpu_custom_call.1} parent=1 // pred_check
      _
    $region19: #{tpu_custom_call.1} parent=1 // pred_check_branch
      %80 = sbr.rel (0) target = $region21
    $region20: #{tpu_custom_call.1} parent=1 // pred_region
      %s82 = ssub.s32 16, 16
      %83 = vsyncadd [#allocation7], %s82
      %s85 = sshll.u32 [#allocation8], 4
      %s86 = int_to_ptr.vmem [resolvable:$true] %s85
      %88 = dma.vmem_to_hbm [thread:$0]  %s86, 16, %s1, [#allocation7]
    $region21: #{tpu_custom_call.1} parent=1 // pred_fallthru
      _
    // Predicated region
    $region22: #{tpu_custom_call.1} parent=1 // pred_check
      _
    $region23: #{tpu_custom_call.1} parent=1 // pred_check_branch
      %90 = sbr.rel (0) target = $region25
    $region24: #{tpu_custom_call.1} parent=1 // pred_region
      %91 = dma.done [#allocation7], 16
    $region25: #{tpu_custom_call.1} parent=1 // pred_fallthru
      _
    %92 = vsyncpa [#allocation6], 1
    %93 = vsyncpa [#allocation7], 1

</llo_original>
